<compile_context>
chip_gen: v7x
topology: tpu7x:2x2x1
jax: 0.10.0
libtpu: 0.0.40
codegen_flags: <defaults>
</compile_context>

<pallas_src>
import functools
import math

import jax
import jax.numpy as jnp
from jax.experimental import pallas as pl
from jax.experimental.pallas import tpu as pltpu

_LANE = 128


def _round_up(x, m):
    return (x + m - 1) // m * m


def _vmem_limit(*block_bytes):
    est = 3 * sum(block_bytes) + (4 << 20)
    return int(min(128 << 20, max(32 << 20, est)))


def _conv_tile(x_ref, w_ref, *, kernel_size, dilation, stride, l_out):
    """Conv1d for one (batch, C_out-tile) as ONE deep 2D matmul (im2col over K).

    x_ref: (1, L_pad, C_in_pad)  channels-last padded input block
    w_ref: (K*C_in_pad, TCO)     tap-major flattened weights
    returns f32 (L_out, TCO)
    """
    taps = []
    for j in range(kernel_size):
        start = j * dilation
        if stride == 1:
            xj = x_ref[0, pl.ds(start, l_out), :]
        else:
            # TODO(synk): push the stride decimation into the DMA/index_map
            # instead of an in-register strided slice.
            span = stride * (l_out - 1) + 1
            xj = x_ref[0, pl.ds(start, span), :][::stride]
        taps.append(xj.astype(jnp.float32))
    xcat = jnp.concatenate(taps, axis=-1)                        # (L_out, K*C_in_pad)
    return jnp.dot(xcat, w_ref[...].astype(jnp.float32),
                   preferred_element_type=jnp.float32)           # (L_out, TCO)


def _stats_kernel(x_ref, w_ref, stats_ref, *, kernel_size, dilation, stride, l_out):
    acc = _conv_tile(x_ref, w_ref, kernel_size=kernel_size, dilation=dilation,
                     stride=stride, l_out=l_out)
    s = jnp.sum(acc, axis=0, keepdims=True)                      # (1, TCO)
    ss = jnp.sum(acc * acc, axis=0, keepdims=True)               # (1, TCO)
    stats_ref[0, :, :] = jnp.concatenate([s, ss], axis=0)        # (2, TCO)


def _norm_kernel(x_ref, w_ref, scale_ref, shift_ref, o_ref,
                 *, kernel_size, dilation, stride, l_out):
    acc = _conv_tile(x_ref, w_ref, kernel_size=kernel_size, dilation=dilation,
                     stride=stride, l_out=l_out)
    y = acc * scale_ref[...].astype(jnp.float32) + shift_ref[...].astype(jnp.float32)
    o_ref[0, :, :] = jnp.maximum(y, 0.0).astype(o_ref.dtype)


def tdnn_block(x_ncl, weight, bias, gamma, beta, *,
               kernel_size, stride, dilation, eps=1e-5):
    """x_ncl: (N, C_in, L) float (PyTorch NCL). Returns (N, C_out, L_out)."""
    del bias  # conv bias cancels exactly under training-mode BatchNorm
    N, C_in, L_in = x_ncl.shape
    C_out = weight.shape[0]
    K = kernel_size

    # 'same' padding, mirroring get_padding_elem()
    if stride > 1:
        pad = K // 2
    else:
        l_out_nom = (L_in - dilation * (K - 1) - 1) // stride + 1
        pad = (L_in - l_out_nom) // 2
    # TODO(synk): fold the reflect pad and the NCL<->NLC transposes into the
    # kernel (edge-tile handling) to remove the wrapper-side HBM round trips.
    x_pad = jnp.pad(x_ncl, ((0, 0), (0, 0), (pad, pad)), mode='reflect')
    L_pad = L_in + 2 * pad
    L_out = (L_pad - dilation * (K - 1) - 1) // stride + 1

    C_in_p = _round_up(C_in, _LANE)
    C_out_p = _round_up(C_out, _LANE)
    tco = 256 if C_out_p % 256 == 0 else 128                     # lane-dense C tile
    n_co = C_out_p // tco

    # channels-last + channel padding (zero channels x zero weights contribute 0)
    x_nlc = jnp.transpose(x_pad, (0, 2, 1)).astype(jnp.float32)  # (N, L_pad, C_in)
    if C_in_p != C_in:
        x_nlc = jnp.pad(x_nlc, ((0, 0), (0, 0), (0, C_in_p - C_in)))

    # weight (C_out, C_in, K) -> tap-major flattened (K*C_in_pad, C_out_pad)
    w = jnp.transpose(weight, (2, 1, 0))                         # (K, C_in, C_out)
    w = jnp.pad(w, ((0, 0), (0, C_in_p - C_in), (0, C_out_p - C_out)))
    w2d = w.reshape(K * C_in_p, C_out_p).astype(jnp.float32)

    x_spec = pl.BlockSpec((1, L_pad, C_in_p), lambda n, c: (n, 0, 0))
    w_spec = pl.BlockSpec((K * C_in_p, tco), lambda n, c: (0, c))

    x_blk_b = L_pad * C_in_p * 4
    w_blk_b = K * C_in_p * tco * 4
    im2col_b = L_out * K * C_in_p * 4
    out_blk_b = L_out * tco * 4

    # ---- pass 1: conv + per-channel partial (sum, sum-of-squares) -------------
    stats = pl.pallas_call(
        functools.partial(_stats_kernel, kernel_size=K, dilation=dilation,
                          stride=stride, l_out=L_out),
        out_shape=jax.ShapeDtypeStruct((N, 2, C_out_p), jnp.float32),
        grid=(N, n_co),
        in_specs=[x_spec, w_spec],
        out_specs=pl.BlockSpec((1, 2, tco), lambda n, c: (n, 0, c)),
        compiler_params=pltpu.CompilerParams(
            dimension_semantics=("parallel", "parallel"),
            vmem_limit_bytes=_vmem_limit(x_blk_b, w_blk_b, im2col_b)),
    )(x_nlc, w2d)

    # ---- BatchNorm statistics (tiny per-channel vectors, plain JAX) ------------
    cnt = float(N * L_out)
    tot = jnp.sum(stats[:, 0, :C_out], axis=0)
    tot2 = jnp.sum(stats[:, 1, :C_out], axis=0)
    mean = tot / cnt
    var = jnp.maximum(tot2 / cnt - mean * mean, 0.0)   # biased var (training mode)
    inv = jax.lax.rsqrt(var + eps)
    scale = gamma.astype(jnp.float32) * inv
    shift = beta.astype(jnp.float32) - mean * scale
    scale_p = jnp.zeros((1, C_out_p), jnp.float32).at[0, :C_out].set(scale)
    shift_p = jnp.zeros((1, C_out_p), jnp.float32).at[0, :C_out].set(shift)

    # ---- pass 2: conv (recomputed, avoids HBM intermediate) + BN + ReLU --------
    out_nlc = pl.pallas_call(
        functools.partial(_norm_kernel, kernel_size=K, dilation=dilation,
                          stride=stride, l_out=L_out),
        out_shape=jax.ShapeDtypeStruct((N, L_out, C_out_p), x_ncl.dtype),
        grid=(N, n_co),
        in_specs=[x_spec, w_spec,
                  pl.BlockSpec((1, tco), lambda n, c: (0, c)),
                  pl.BlockSpec((1, tco), lambda n, c: (0, c))],
        out_specs=pl.BlockSpec((1, L_out, tco), lambda n, c: (n, 0, c)),
        compiler_params=pltpu.CompilerParams(
            dimension_semantics=("parallel", "parallel"),
            vmem_limit_bytes=_vmem_limit(x_blk_b, w_blk_b, im2col_b, out_blk_b)),
    )(x_nlc, w2d, scale_p, shift_p)

    return jnp.transpose(out_nlc[:, :, :C_out], (0, 2, 1))       # (N, C_out, L_out)


if __name__ == "__main__":
    # TDNNBlock(in_channels=4, out_channels=8, kernel_size=3, stride=1, dilation=1)
    N, C_in, L = 2, 4, 16
    C_out, K, stride, dilation = 8, 3, 1, 1

    key = jax.random.PRNGKey(0)
    kx, kw, kb = jax.random.split(key, 3)

    x = jax.random.normal(kx, (N, C_in, L), dtype=jnp.float32)

    # Deterministic parameter init (Conv1d-style uniform bound = 1/sqrt(fan_in)).
    bound = 1.0 / math.sqrt(C_in * K)
    weight = jax.random.uniform(kw, (C_out, C_in, K), jnp.float32, -bound, bound)
    bias = jax.random.uniform(kb, (C_out,), jnp.float32, -bound, bound)
    gamma = jnp.ones((C_out,), jnp.float32)   # BatchNorm weight init
    beta = jnp.zeros((C_out,), jnp.float32)   # BatchNorm bias init

    out = tdnn_block(x, weight, bias, gamma, beta,
                     kernel_size=K, stride=stride, dilation=dilation)
    out = jax.block_until_ready(out)
    assert out.shape == (N, C_out, L), out.shape
    assert bool(jnp.all(jnp.isfinite(out)))
    print("KERNEL_OK")
</pallas_src>

<mosaic_0001>
module attributes {stable_mosaic.version = 11 : i64} {
  func.func @_stats_kernel(%arg0: i32, %arg1: i32, %arg2: memref<1x18x128xf32, #tpu.memory_space<vmem>>, %arg3: memref<384x128xf32, #tpu.memory_space<vmem>>, %arg4: memref<1x2x128xf32, #tpu.memory_space<vmem>>) attributes {dimension_semantics = [#tpu.dimension_semantics<parallel>, #tpu.dimension_semantics<parallel>], iteration_bounds = array<i64: 2, 1>, scalar_prefetch = 0 : i64, scratch_operands = 0 : i64, tpu.core_type = #tpu.core_type<tc>, window_params = [{transform_indices = @transform_0, window_bounds = array<i64: 1, 18, 128>}, {transform_indices = @transform_1, window_bounds = array<i64: 384, 128>}, {transform_indices = @transform_2, window_bounds = array<i64: 1, 2, 128>}]} {
    %c0 = arith.constant 0 : index
    %c0_0 = arith.constant 0 : index
    %c0_1 = arith.constant 0 : index
    %0 = vector.load %arg2[%c0, %c0_0, %c0_1] : memref<1x18x128xf32, #tpu.memory_space<vmem>>, vector<1x16x128xf32>
    %1 = vector.shape_cast %0 : vector<1x16x128xf32> to vector<16x128xf32>
    %c0_2 = arith.constant 0 : index
    %c1 = arith.constant 1 : index
    %c0_3 = arith.constant 0 : index
    %2 = vector.load %arg2[%c0_2, %c1, %c0_3] : memref<1x18x128xf32, #tpu.memory_space<vmem>>, vector<1x16x128xf32>
    %3 = vector.shape_cast %2 : vector<1x16x128xf32> to vector<16x128xf32>
    %c0_4 = arith.constant 0 : index
    %c2 = arith.constant 2 : index
    %c0_5 = arith.constant 0 : index
    %4 = vector.load %arg2[%c0_4, %c2, %c0_5] : memref<1x18x128xf32, #tpu.memory_space<vmem>>, vector<1x16x128xf32>
    %5 = vector.shape_cast %4 : vector<1x16x128xf32> to vector<16x128xf32>
    %6 = tpu.concatenate %1, %3, %5 in 1 : vector<16x128xf32>, vector<16x128xf32>, vector<16x128xf32> -> vector<16x384xf32>
    %c0_6 = arith.constant 0 : index
    %c0_7 = arith.constant 0 : index
    %7 = vector.load %arg3[%c0_6, %c0_7] : memref<384x128xf32, #tpu.memory_space<vmem>>, vector<384x128xf32>
    %cst = arith.constant dense<0.000000e+00> : vector<16x128xf32>
    %8 = tpu.matmul %6, %7, %cst {dimension_numbers = #tpu.dot_dimension_numbers<[1], [0], [0], [1], [0, 0, 1, 1], [], []>} : vector<16x384xf32>, vector<384x128xf32>, vector<16x128xf32> -> vector<16x128xf32>
    %cst_8 = arith.constant dense<0.000000e+00> : vector<128xf32>
    %9 = vector.multi_reduction <add>, %8, %cst_8 [0] : vector<16x128xf32> to vector<128xf32>
    %10 = vector.shape_cast %9 : vector<128xf32> to vector<1x128xf32>
    %11 = arith.mulf %8, %8 : vector<16x128xf32>
    %cst_9 = arith.constant dense<0.000000e+00> : vector<128xf32>
    %12 = vector.multi_reduction <add>, %11, %cst_9 [0] : vector<16x128xf32> to vector<128xf32>
    %13 = vector.shape_cast %12 : vector<128xf32> to vector<1x128xf32>
    %14 = tpu.concatenate %10, %13 in 0 : vector<1x128xf32>, vector<1x128xf32> -> vector<2x128xf32>
    %c0_10 = arith.constant 0 : index
    %c0_11 = arith.constant 0 : index
    %c0_12 = arith.constant 0 : index
    %15 = vector.load %arg4[%c0_10, %c0_11, %c0_12] : memref<1x2x128xf32, #tpu.memory_space<vmem>>, vector<1x2x128xf32>
    %16 = vector.shape_cast %15 : vector<1x2x128xf32> to vector<2x128xf32>
    %17 = vector.shape_cast %14 : vector<2x128xf32> to vector<1x2x128xf32>
    tpu.vector_store %arg4[%c0_10, %c0_11, %c0_12], %17 {strides = array<i32>} : memref<1x2x128xf32, #tpu.memory_space<vmem>>, vector<1x2x128xf32>,
    return
  }
  func.func @transform_0(%arg0: i32, %arg1: i32) -> (i32, i32, i32) {
    %c0_i32 = arith.constant 0 : i32
    %c0_i32_0 = arith.constant 0 : i32
    %c0_i32_1 = arith.constant 0 : i32
    return %arg0, %c0_i32, %c0_i32_0 : i32, i32, i32
  }
  func.func @transform_1(%arg0: i32, %arg1: i32) -> (i32, i32) {
    %c0_i32 = arith.constant 0 : i32
    %c0_i32_0 = arith.constant 0 : i32
    return %c0_i32, %arg1 : i32, i32
  }
  func.func @transform_2(%arg0: i32, %arg1: i32) -> (i32, i32, i32) {
    %c0_i32 = arith.constant 0 : i32
    %c0_i32_0 = arith.constant 0 : i32
    return %arg0, %c0_i32, %arg1 : i32, i32, i32
  }
}

</mosaic_0001>

<llo_original>
// kernel: tpu_custom_call.1
$region0: #{tpu_custom_call.1}
  #allocation0 [shape = 'u32[]', space=smem, size = 0x4, offset = 0x4, fixed_abs, tag = 'smem constant byte address 0x4 - core index']
  #allocation1 [shape = 'u32[144,128]{1,0:T(1,128)}', space=vmem, size = 0x12000, scoped, tag = 'internal scratch']
  %s0 = inlined_call_operand.vmem [shape: f32[2,18,128], index: 0, kind: input, shape index: {}]
  %s1 = inlined_call_operand.hbm [shape: f32[384,128], index: 1, kind: input, shape index: {}]
  %s2 = inlined_call_operand.hbm [shape: f32[2,2,128], index: 2, kind: output, shape index: {}]
  %s3 = sld [smem:[#allocation0]]
  $region45: #{tpu_custom_call.1} parent=0
    _
  %s5 = ssub.s32 1, %s3
  %s6 = scalar_select 0, %s5, %s3
  $region1: #{tpu_custom_call.1} parent=0
    #allocation2 [shape = 'u8[196608]{0}', space=vmem, size = 0x30000, scoped, tag = 'input window, operand 1, single buffered']
    #allocation3 [shape = 's32[2]{0}', space=sflag, size = 0x8, scoped, tag = 'scoped memory for tpu_custom_call.1']
    #allocation4 [shape = 's32[2]{0}', space=sflag, size = 0x8, scoped, tag = 'scoped memory for tpu_custom_call.1']
    #allocation5 [shape = 'u8[2048]{0}', space=vmem, size = 0x800, scoped, tag = 'output window, operand 0']
    %7 = vsyncpa [#allocation3], 0
    %8 = vsyncpa [#allocation4], 0
    %s9 = scalar_lea.sflag [#allocation4], 1
    %10 = vsyncpa %s9, 0
    loop: start=0, step=1, limit=4
    $region2: #{tpu_custom_call.1} parent=1 // loop_pre_header
      _
    $region3: #{tpu_custom_call.1} parent=1 // loop_header
      %s12 = sphi 0, %s16
      %p13 = scmp.ge.s32.totalorder %s12, 4
      %s19 = sphi 0, %s31
      %s20 = sphi 0, %s27
      %s21 = sphi 0, %s19
      %s22 = sphi 0, %s20
      %s23 = sphi 0, %s21
      %s24 = sphi 0, %s22
      %s34 = sphi 0, %s36
      %s37 = sphi 0, %s34
      %s38 = sphi 0, %s37
      %s54 = sphi 0, %s38
      %s60 = sphi 0, %s62
      %s63 = sphi 0, %s60
      %s64 = sphi 0, %s63
      %s80 = sphi 0, %s64
      %s88 = sphi 0, %s90
      %s91 = sphi 0, %s88
      %s92 = sphi 0, %s91
      %s108 = sphi 0, %s92
    $region4: #{tpu_custom_call.1} parent=1 // loop_header_branch
      %15 = sbr.rel (%p13) target = $region8
    $region5: #{tpu_custom_call.1} parent=1 // loop_body
      %s17 = ssub.s32 %s12, 1
      %s18 = ssub.s32 %s12, 2
      %s25 = sadd.s32 1, %s20
      %p26 = scmp.ge.s32.totalorder %s25, 1
      %s27 = scalar_select %p26, 0, %s25
      %s28 = sadd.s32 1, %s19
      %s29 = scalar_select %p26, %s28, %s19
      %p30 = scmp.ge.s32.totalorder %s29, 2
      %s31 = scalar_select %p30, 0, %s29
      %s32 = ssub.s32 %s19, %s31
      %p33 = scmp.eq.s32.totalorder %s32, 0
      %s35 = sadd.s32 %s34, 1
      %s36 = scalar_select %p33, %s34, %s35
      %p39 = pneg %p33
      %p40 = scmp.eq.s32.totalorder %s12, 1
      %p41 = por %p39, %p40
      %p42 = scmp.ne.s32.totalorder %s34, %s37
      %p43 = scmp.eq.s32.totalorder %s12, 0
      %p44 = por %p42, %p43
      %p45 = scmp.ne.s32.totalorder %s34, %s37
      %p46 = scmp.eq.s32.totalorder %s17, 1
      %p47 = por %p45, %p46
      %p48 = scmp.ne.s32.totalorder %s37, %s38
      %p49 = scmp.eq.s32.totalorder %s17, 0
      %p50 = por %p48, %p49
      %p51 = scmp.ne.s32.totalorder %s37, %s38
      %p52 = scmp.eq.s32.totalorder %s18, 1
      %p53 = por %p51, %p52
      %p55 = scmp.ne.s32.totalorder %s38, %s54
      %p56 = scmp.eq.s32.totalorder %s18, 0
      %p57 = por %p55, %p56
      %s58 = ssub.s32 %s20, %s27
      %p59 = scmp.eq.s32.totalorder %s58, 0
      %s61 = sadd.s32 %s60, 1
      %s62 = scalar_select %p59, %s60, %s61
      %p65 = pneg %p59
      %p66 = scmp.eq.s32.totalorder %s12, 1
      %p67 = por %p65, %p66
      %p68 = scmp.ne.s32.totalorder %s60, %s63
      %p69 = scmp.eq.s32.totalorder %s12, 0
      %p70 = por %p68, %p69
      %p71 = scmp.ne.s32.totalorder %s60, %s63
      %p72 = scmp.eq.s32.totalorder %s17, 1
      %p73 = por %p71, %p72
      %p74 = scmp.ne.s32.totalorder %s63, %s64
      %p75 = scmp.eq.s32.totalorder %s17, 0
      %p76 = por %p74, %p75
      %p77 = scmp.ne.s32.totalorder %s63, %s64
      %p78 = scmp.eq.s32.totalorder %s18, 1
      %p79 = por %p77, %p78
      %p81 = scmp.ne.s32.totalorder %s64, %s80
      %p82 = scmp.eq.s32.totalorder %s18, 0
      %p83 = por %p81, %p82
      %s84 = ssub.s32 %s19, %s31
      %s85 = ssub.s32 %s20, %s27
      %s86 = sor.u32 %s84, %s85
      %p87 = scmp.eq.s32.totalorder %s86, 0
      %s89 = sadd.s32 %s88, 1
      %s90 = scalar_select %p87, %s88, %s89
      %p93 = pneg %p87
      %p94 = scmp.eq.s32.totalorder %s12, 1
      %p95 = por %p93, %p94
      %p96 = scmp.ne.s32.totalorder %s88, %s91
      %p97 = scmp.eq.s32.totalorder %s12, 0
      %p98 = por %p96, %p97
      %p99 = scmp.ne.s32.totalorder %s88, %s91
      %p100 = scmp.eq.s32.totalorder %s17, 1
      %p101 = por %p99, %p100
      %p102 = scmp.ne.s32.totalorder %s91, %s92
      %p103 = scmp.eq.s32.totalorder %s17, 0
      %p104 = por %p102, %p103
      %p105 = scmp.ne.s32.totalorder %s91, %s92
      %p106 = scmp.eq.s32.totalorder %s18, 1
      %p107 = por %p105, %p106
      %p109 = scmp.ne.s32.totalorder %s92, %s108
      %p110 = scmp.eq.s32.totalorder %s18, 0
      %p111 = por %p109, %p110
      %p112 = scmp.le.s32.totalorder 1, %s12
      %p113 = scmp.lt.s32.totalorder %s12, 3
      %p114 = pnand %p112, %p113
      %p115 = pneg %p114
      // Predicated region
      $region9: #{tpu_custom_call.1} parent=5 // pred_check
        _
      $region10: #{tpu_custom_call.1} parent=5 // pred_check_branch
        %117 = sbr.rel (%p114) target = $region12
      $region11: #{tpu_custom_call.1} parent=5 // pred_region
        %s118 = ssub.s32 %s12, 1
        // Predicated region
        $region13: #{tpu_custom_call.1} parent=11 // pred_check
          %p119 = pneg %p76
        $region14: #{tpu_custom_call.1} parent=11 // pred_check_branch
          %121 = sbr.rel (%p119) target = $region16
        $region15: #{tpu_custom_call.1} parent=11 // pred_region
          %s123 = ssub.s32 6144, 6144
          %124 = vsyncadd [#allocation3], %s123
          %s125 = smul.addr %s22, 128
          %s126 = scalar_lea.hbm %s1, %s125
          %s127 = sshll.u32 [#allocation2], 4
          %s128 = int_to_ptr.vmem [resolvable:$true] %s127
          %133 = dma.hbm_to_vmem [thread:$0]  %s126, 6144, %s128, [#allocation3], 128, 128, 8
        $region16: #{tpu_custom_call.1} parent=11 // pred_fallthru
          _
      $region12: #{tpu_custom_call.1} parent=5 // pred_fallthru
        _
      %p134 = scmp.lt.s32.totalorder %s12, 2
      // Predicated region
      $region17: #{tpu_custom_call.1} parent=5 // pred_check
        %p135 = pneg %p134
      $region18: #{tpu_custom_call.1} parent=5 // pred_check_branch
        %137 = sbr.rel (%p135) target = $region20
      $region19: #{tpu_custom_call.1} parent=5 // pred_region
        // Predicated region
        $region21: #{tpu_custom_call.1} parent=19 // pred_check
          %p138 = pneg %p44
        $region22: #{tpu_custom_call.1} parent=19 // pred_check_branch
          %140 = sbr.rel (%p138) target = $region24
        $region23: #{tpu_custom_call.1} parent=19 // pred_region
          %p141 = scmp.lt.s32.totalorder %s19, 1
          %s142 = scalar_select %p141, %s19, 1
          %s143 = smul.addr %s142, 3
          %s144 = smul.addr %s143, 8
          %s145 = scalar_lea.vmem %s0, %s144
        $region24: #{tpu_custom_call.1} parent=19 // pred_fallthru
          _
      $region20: #{tpu_custom_call.1} parent=5 // pred_fallthru
        _
      %p146 = scmp.le.s32.totalorder 1, %s12
      %p147 = scmp.lt.s32.totalorder %s12, 3
      %p148 = pnand %p146, %p147
      %p149 = pneg %p148
      // Predicated region
      $region25: #{tpu_custom_call.1} parent=5 // pred_check
        _
      $region26: #{tpu_custom_call.1} parent=5 // pred_check_branch
        %151 = sbr.rel (%p148) target = $region28
      $region27: #{tpu_custom_call.1} parent=5 // pred_region
        %s152 = ssub.s32 %s12, 1
        // Predicated region
        $region29: #{tpu_custom_call.1} parent=27 // pred_check
          %p153 = pneg %p76
        $region30: #{tpu_custom_call.1} parent=27 // pred_check_branch
          %155 = sbr.rel (%p153) target = $region32
        $region31: #{tpu_custom_call.1} parent=27 // pred_region
          %156 = dma.done [#allocation3], 6144
        $region32: #{tpu_custom_call.1} parent=27 // pred_fallthru
          _
        %p157 = scmp.lt.s32.totalorder %s21, 1
        %s158 = scalar_select %p157, %s21, 1
        %s159 = smul.addr %s158, 3
        %s160 = smul.addr %s159, 8
        %s161 = scalar_lea.vmem %s0, %s160
        %p162 = pneg %p50
        %p163 = pneg %p47
        %p164 = pneg %p76
        %p165 = pneg %p73
        %p166 = pneg %p104
        %p167 = pneg %p101
        %s168 = sand.u32 %s91, 1
        %s169 = scalar_lea.sflag [#allocation4], %s168
        %s170 = sand.u32 %s91, 1
        %s171 = smul.addr %s170, 2
        %s172 = scalar_lea.vmem [#allocation5], %s171
        %p173 = scmp.lt.s32.totalorder %s21, 1
        %s174 = scalar_select %p173, %s21, 1
        %s175 = smul.addr %s174, 3
        %s176 = smul.addr %s175, 8
        %s177 = scalar_lea.vmem %s0, %s176
        %v178 = vld [vmem:[%s177] sm:$0xff]
        %v179 = vld [vmem:[%s177 + $0x8] sm:$0xff]
        %v180 = vld [vmem:[%s177 + $0x1] sm:$0xff]
        %v181 = vld [vmem:[%s177 + $0x9] sm:$0xff]
        %v182 = vld [vmem:[%s177 + $0x2] sm:$0xff]
        %v183 = vld [vmem:[%s177 + $0xa] sm:$0xff]
        %v184 = vld [vmem:[#allocation2] sm:$0xff]
        %v185 = vld [vmem:[#allocation2 + $0x8] sm:$0xff]
        %v186 = vld [vmem:[#allocation2 + $0x10] sm:$0xff]
        %v187 = vld [vmem:[#allocation2 + $0x18] sm:$0xff]
        %v188 = vld [vmem:[#allocation2 + $0x20] sm:$0xff]
        %v189 = vld [vmem:[#allocation2 + $0x28] sm:$0xff]
        %v190 = vld [vmem:[#allocation2 + $0x30] sm:$0xff]
        %v191 = vld [vmem:[#allocation2 + $0x38] sm:$0xff]
        %v192 = vld [vmem:[#allocation2 + $0x40] sm:$0xff]
        %v193 = vld [vmem:[#allocation2 + $0x48] sm:$0xff]
        %v194 = vld [vmem:[#allocation2 + $0x50] sm:$0xff]
        %v195 = vld [vmem:[#allocation2 + $0x58] sm:$0xff]
        %v196 = vld [vmem:[#allocation2 + $0x60] sm:$0xff]
        %v197 = vld [vmem:[#allocation2 + $0x68] sm:$0xff]
        %v198 = vld [vmem:[#allocation2 + $0x70] sm:$0xff]
        %v199 = vld [vmem:[#allocation2 + $0x78] sm:$0xff]
        %v200 = vld [vmem:[#allocation2 + $0x80] sm:$0xff]
        %v201 = vld [vmem:[#allocation2 + $0x88] sm:$0xff]
        %v202 = vld [vmem:[#allocation2 + $0x90] sm:$0xff]
        %v203 = vld [vmem:[#allocation2 + $0x98] sm:$0xff]
        %v204 = vld [vmem:[#allocation2 + $0xa0] sm:$0xff]
        %v205 = vld [vmem:[#allocation2 + $0xa8] sm:$0xff]
        %v206 = vld [vmem:[#allocation2 + $0xb0] sm:$0xff]
        %v207 = vld [vmem:[#allocation2 + $0xb8] sm:$0xff]
        %v208 = vld [vmem:[#allocation2 + $0xc0] sm:$0xff]
        %v209 = vld [vmem:[#allocation2 + $0xc8] sm:$0xff]
        %v210 = vld [vmem:[#allocation2 + $0xd0] sm:$0xff]
        %v211 = vld [vmem:[#allocation2 + $0xd8] sm:$0xff]
        %v212 = vld [vmem:[#allocation2 + $0xe0] sm:$0xff]
        %v213 = vld [vmem:[#allocation2 + $0xe8] sm:$0xff]
        %v214 = vld [vmem:[#allocation2 + $0xf0] sm:$0xff]
        %v215 = vld [vmem:[#allocation2 + $0xf8] sm:$0xff]
        %v216 = vld [vmem:[#allocation2 + $0x100] sm:$0xff]
        %v217 = vld [vmem:[#allocation2 + $0x108] sm:$0xff]
        %v218 = vld [vmem:[#allocation2 + $0x110] sm:$0xff]
        %v219 = vld [vmem:[#allocation2 + $0x118] sm:$0xff]
        %v220 = vld [vmem:[#allocation2 + $0x120] sm:$0xff]
        %v221 = vld [vmem:[#allocation2 + $0x128] sm:$0xff]
        %v222 = vld [vmem:[#allocation2 + $0x130] sm:$0xff]
        %v223 = vld [vmem:[#allocation2 + $0x138] sm:$0xff]
        %v224 = vld [vmem:[#allocation2 + $0x140] sm:$0xff]
        %v225 = vld [vmem:[#allocation2 + $0x148] sm:$0xff]
        %v226 = vld [vmem:[#allocation2 + $0x150] sm:$0xff]
        %v227 = vld [vmem:[#allocation2 + $0x158] sm:$0xff]
        %v228 = vld [vmem:[#allocation2 + $0x160] sm:$0xff]
        %v229 = vld [vmem:[#allocation2 + $0x168] sm:$0xff]
        %v230 = vld [vmem:[#allocation2 + $0x170] sm:$0xff]
        %v231 = vld [vmem:[#allocation2 + $0x178] sm:$0xff]
        %232 = vmatprep.subr.mxu0 0.0
        %233 = vmatpush1.msra.mxu0 %v184
        %234 = vmatprep.subr.mxu0 0.0
        %235 = vmatpush1.msra.mxu0 %v185
        %236 = vmatprep.subr.mxu0 0.0
        %237 = vmatpush1.msra.mxu0 %v186
        %238 = vmatprep.subr.mxu0 0.0
        %239 = vmatpush1.msra.mxu0 %v187
        %240 = vmatprep.subr.mxu0 0.0
        %241 = vmatpush1.msra.mxu0 %v188
        %242 = vmatprep.subr.mxu0 0.0
        %243 = vmatpush1.msra.mxu0 %v189
        %244 = vmatprep.subr.mxu0 0.0
        %245 = vmatpush1.msra.mxu0 %v190
        %246 = vmatprep.subr.mxu0 0.0
        %247 = vmatpush1.msra.mxu0 %v191
        %248 = vmatprep.subr.mxu0 0.0
        %249 = vmatpush1.msra.mxu0 %v192
        %250 = vmatprep.subr.mxu0 0.0
        %251 = vmatpush1.msra.mxu0 %v193
        %252 = vmatprep.subr.mxu0 0.0
        %253 = vmatpush1.msra.mxu0 %v194
        %254 = vmatprep.subr.mxu0 0.0
        %255 = vmatpush1.msra.mxu0 %v195
        %256 = vmatprep.subr.mxu0 0.0
        %257 = vmatpush1.msra.mxu0 %v196
        %258 = vmatprep.subr.mxu0 0.0
        %259 = vmatpush1.msra.mxu0 %v197
        %260 = vmatprep.subr.mxu0 0.0
        %261 = vmatpush1.msra.mxu0 %v198
        %262 = vmatprep.subr.mxu0 0.0
        %263 = vmatpush1.msra.mxu0 %v199
        %264 = vmatprep.subr.mxu0 0.0
        %265 = vmatpush1.msra.mxu0 %v200
        %266 = vmatprep.subr.mxu0 0.0
        %267 = vmatpush1.msra.mxu0 %v201
        %268 = vmatprep.subr.mxu0 0.0
        %269 = vmatpush1.msra.mxu0 %v202
        %270 = vmatprep.subr.mxu0 0.0
        %271 = vmatpush1.msra.mxu0 %v203
        %272 = vmatprep.subr.mxu0 0.0
        %273 = vmatpush1.msra.mxu0 %v204
        %274 = vmatprep.subr.mxu0 0.0
        %275 = vmatpush1.msra.mxu0 %v205
        %276 = vmatprep.subr.mxu0 0.0
        %277 = vmatpush1.msra.mxu0 %v206
        %278 = vmatprep.subr.mxu0 0.0
        %279 = vmatpush1.msra.mxu0 %v207
        %280 = vmatprep.subr.mxu0 0.0
        %281 = vmatpush1.msra.mxu0 %v208
        %282 = vmatprep.subr.mxu0 0.0
        %283 = vmatpush1.msra.mxu0 %v209
        %284 = vmatprep.subr.mxu0 0.0
        %285 = vmatpush1.msra.mxu0 %v210
        %286 = vmatprep.subr.mxu0 0.0
        %287 = vmatpush1.msra.mxu0 %v211
        %288 = vmatprep.subr.mxu0 0.0
        %289 = vmatpush1.msra.mxu0 %v212
        %290 = vmatprep.subr.mxu0 0.0
        %291 = vmatpush1.msra.mxu0 %v213
        %292 = vmatprep.subr.mxu0 0.0
        %293 = vmatpush1.msra.mxu0 %v214
        %294 = vmatprep.subr.mxu0 0.0
        %295 = vmatpush1.msra.mxu0 %v215
        %296 = vmatprep.mubr.f32.mxu0 %v180
        %297 = vmatmul.mubr.f32.gmra.mrb[0].mxu0 %v178
        %v298 = vpop.f32.mrb[0].mxu0
        %v299 = vadd.f32 0.0, %v298
        %v300 = vpop.f32.mrb[0].mxu0
        %301 = vmatprep.mubr.f32.mxu0 %v181
        %302 = vmatmul.mubr.f32.gmra.mrb[0].mxu0 %v179
        %v303 = vpop.f32.mrb[0].mxu0
        %v304 = vadd.f32 0.0, %v303
        %v305 = vpop.f32.mrb[0].mxu0
        %306 = vdwg.mxu0
        %307 = vmatprep.subr.mxu0 0.0
        %308 = vmatpush1.msra.mxu0 %v216
        %309 = vmatprep.subr.mxu0 0.0
        %310 = vmatpush1.msra.mxu0 %v217
        %311 = vmatprep.subr.mxu0 0.0
        %312 = vmatpush1.msra.mxu0 %v218
        %313 = vmatprep.subr.mxu0 0.0
        %314 = vmatpush1.msra.mxu0 %v219
        %315 = vmatprep.subr.mxu0 0.0
        %316 = vmatpush1.msra.mxu0 %v220
        %317 = vmatprep.subr.mxu0 0.0
        %318 = vmatpush1.msra.mxu0 %v221
        %319 = vmatprep.subr.mxu0 0.0
        %320 = vmatpush1.msra.mxu0 %v222
        %321 = vmatprep.subr.mxu0 0.0
        %322 = vmatpush1.msra.mxu0 %v223
        %323 = vmatprep.subr.mxu0 0.0
        %324 = vmatpush1.msra.mxu0 %v224
        %325 = vmatprep.subr.mxu0 0.0
        %326 = vmatpush1.msra.mxu0 %v225
        %327 = vmatprep.subr.mxu0 0.0
        %328 = vmatpush1.msra.mxu0 %v226
        %329 = vmatprep.subr.mxu0 0.0
        %330 = vmatpush1.msra.mxu0 %v227
        %331 = vmatprep.subr.mxu0 0.0
        %332 = vmatpush1.msra.mxu0 %v228
        %333 = vmatprep.subr.mxu0 0.0
        %334 = vmatpush1.msra.mxu0 %v229
        %335 = vmatprep.subr.mxu0 0.0
        %336 = vmatpush1.msra.mxu0 %v230
        %337 = vmatprep.subr.mxu0 0.0
        %338 = vmatpush1.msra.mxu0 %v231
        %339 = vmatprep.subr.mxu0 0.0
        %340 = vmatpush1.msra.mxu0 0.0
        %341 = vmatprep.subr.mxu0 0.0
        %342 = vmatpush1.msra.mxu0 0.0
        %343 = vmatprep.subr.mxu0 0.0
        %344 = vmatpush1.msra.mxu0 0.0
        %345 = vmatprep.subr.mxu0 0.0
        %346 = vmatpush1.msra.mxu0 0.0
        %347 = vmatprep.subr.mxu0 0.0
        %348 = vmatpush1.msra.mxu0 0.0
        %349 = vmatprep.subr.mxu0 0.0
        %350 = vmatpush1.msra.mxu0 0.0
        %351 = vmatprep.subr.mxu0 0.0
        %352 = vmatpush1.msra.mxu0 0.0
        %353 = vmatprep.subr.mxu0 0.0
        %354 = vmatpush1.msra.mxu0 0.0
        %355 = vmatprep.subr.mxu0 0.0
        %356 = vmatpush1.msra.mxu0 0.0
        %357 = vmatprep.subr.mxu0 0.0
        %358 = vmatpush1.msra.mxu0 0.0
        %359 = vmatprep.subr.mxu0 0.0
        %360 = vmatpush1.msra.mxu0 0.0
        %361 = vmatprep.subr.mxu0 0.0
        %362 = vmatpush1.msra.mxu0 0.0
        %363 = vmatprep.subr.mxu0 0.0
        %364 = vmatpush1.msra.mxu0 0.0
        %365 = vmatprep.subr.mxu0 0.0
        %366 = vmatpush1.msra.mxu0 0.0
        %367 = vmatprep.subr.mxu0 0.0
        %368 = vmatpush1.msra.mxu0 0.0
        %369 = vmatprep.subr.mxu0 0.0
        %370 = vmatpush1.msra.mxu0 0.0
        %371 = vmatprep.mubr.f32.mxu0 0.0
        %372 = vmatmul.mubr.f32.gmra.mrb[0].mxu0 %v182
        %v373 = vpop.f32.mrb[0].mxu0
        %v374 = vadd.f32 %v299, %v373
        %v375 = vpop.f32.mrb[0].mxu0
        %376 = vmatprep.mubr.f32.mxu0 0.0
        %377 = vmatmul.mubr.f32.gmra.mrb[0].mxu0 %v183
        %v378 = vpop.f32.mrb[0].mxu0
        %v379 = vadd.f32 %v304, %v378
        %v380 = vpop.f32.mrb[0].mxu0
        %381 = vdwg.mxu0
        %v382 = vadd.f32 %v374, %v379
        %v383 = vrot.slane %v382, 4
        %v384 = vadd.f32 %v382, %v383
        %v385 = vrot.slane %v384, 2
        %v386 = vadd.f32 %v384, %v385
        %v387 = vrot.slane %v386, 1
        %v388 = vadd.f32 %v386, %v387
        %v389 = vmul.f32 %v374, %v374
        %v390 = vmul.f32 %v379, %v379
        %v391 = vadd.f32 %v389, %v390
        %v392 = vrot.slane %v391, 4
        %v393 = vadd.f32 %v391, %v392
        %v394 = vrot.slane %v393, 2
        %v395 = vadd.f32 %v393, %v394
        %v396 = vrot.slane %v395, 1
        %v397 = vadd.f32 %v395, %v396
        %vm398 = vcmask 1040384
        %v399 = vsel %vm398, %v388, %v397
        %400 = vst [vmem:[%s172] sm:$0x3] %v399
        %s401 = sand.u32 %s91, 1
        %s402 = scalar_lea.sflag [#allocation4], %s401
        %s403 = sand.u32 %s91, 1
        %s404 = smul.addr %s403, 2
        %s405 = scalar_lea.vmem [#allocation5], %s404
        // Predicated region
        $region33: #{tpu_custom_call.1} parent=27 // pred_check
          %p406 = pneg %p101
        $region34: #{tpu_custom_call.1} parent=27 // pred_check_branch
          %408 = sbr.rel (%p406) target = $region36
        $region35: #{tpu_custom_call.1} parent=27 // pred_region
          %s410 = ssub.s32 32, 32
          %411 = vsyncadd %s402, %s410
          %s412 = sadd.s32 %s22, %s21
          %s413 = smul.addr %s412, 32
          %s414 = scalar_lea.hbm %s2, %s413
          %s416 = sshll.u32 %s405, 4
          %s417 = int_to_ptr.vmem [resolvable:$true] %s416
          %419 = dma.vmem_to_hbm [thread:$0]  %s417, 32, %s414, %s402
        $region36: #{tpu_custom_call.1} parent=27 // pred_fallthru
          _
      $region28: #{tpu_custom_call.1} parent=5 // pred_fallthru
        _
      %p420 = scmp.le.s32.totalorder 2, %s12
      // Predicated region
      $region37: #{tpu_custom_call.1} parent=5 // pred_check
        %p421 = pneg %p420
      $region38: #{tpu_custom_call.1} parent=5 // pred_check_branch
        %423 = sbr.rel (%p421) target = $region40
      $region39: #{tpu_custom_call.1} parent=5 // pred_region
        %s424 = ssub.s32 %s12, 2
        // Predicated region
        $region41: #{tpu_custom_call.1} parent=39 // pred_check
          %p425 = pneg %p107
        $region42: #{tpu_custom_call.1} parent=39 // pred_check_branch
          %427 = sbr.rel (%p425) target = $region44
        $region43: #{tpu_custom_call.1} parent=39 // pred_region
          %s428 = sand.u32 %s92, 1
          %s429 = scalar_lea.sflag [#allocation4], %s428
          %s430 = sand.u32 %s92, 1
          %s431 = smul.addr %s430, 2
          %s432 = scalar_lea.vmem [#allocation5], %s431
          %433 = dma.done %s429, 32
        $region44: #{tpu_custom_call.1} parent=39 // pred_fallthru
          _
      $region40: #{tpu_custom_call.1} parent=5 // pred_fallthru
        _
    $region6: #{tpu_custom_call.1} parent=1 // loop_footer
      %s16 = sadd.s32 1, %s12
    $region7: #{tpu_custom_call.1} parent=1 // loop_footer_branch
      %11 = sbr.rel target = $region3
    $region8: #{tpu_custom_call.1} parent=1 // loop_exit
      _
    %434 = vsyncpa [#allocation3], 1
    %s435 = scalar_lea.sflag [#allocation3], 1
    %436 = vsyncpa %s435, 1
    %437 = vsyncpa [#allocation4], 1
    %s438 = scalar_lea.sflag [#allocation4], 1
    %439 = vsyncpa %s438, 1

</llo_original>
